<compile_context>
chip_gen: v6e
topology: v6e:2x2x1
jax: 0.10.0
libtpu: 0.0.40
codegen_flags: <defaults>
</compile_context>

<pallas_src>
import functools

import jax
import jax.numpy as jnp
from jax.experimental import pallas as pl
from jax.experimental.pallas import tpu as pltpu


def _ls_ce_kernel(logits_ref, label_ref, loss_ref, *, lb_pos, lb_neg,
                  ignore_index, hw, tile_hw):
    x = logits_ref[...].astype(jnp.float32)            # (1, C, T)  C on sublanes
    lbl = label_ref[...]                                # (1, 1, T)  int32
    num_classes = x.shape[1]

    # log-softmax pieces over the class (sublane) axis; `logs` never built.
    m = jnp.max(x, axis=1, keepdims=True)               # (1, 1, T)
    lse = jnp.log(jnp.sum(jnp.exp(x - m), axis=1, keepdims=True))
    log_z = m + lse                                      # (1, 1, T)

    sum_x = jnp.sum(x, axis=1, keepdims=True)            # (1, 1, T)
    cls = jax.lax.broadcasted_iota(jnp.int32, x.shape, dimension=1)
    x_at_lbl = jnp.sum(jnp.where(cls == lbl, x, 0.0), axis=1, keepdims=True)

    sum_logs = sum_x - num_classes * log_z
    logs_at_label = x_at_lbl - log_z
    loss = -(lb_neg * sum_logs + (lb_pos - lb_neg) * logs_at_label)

    # Zero ignored labels and out-of-range lanes of a ragged last tile.
    pos = jax.lax.broadcasted_iota(jnp.int32, lbl.shape, dimension=2)
    pos = pos + pl.program_id(1) * tile_hw
    valid = jnp.logical_and(pos < hw, lbl != ignore_index)
    loss_ref[...] = jnp.where(valid, loss, 0.0)


def _pick_tile_hw(hw, num_classes, itemsize):
    """Largest lane-dense spatial tile that keeps double-buffered logits small."""
    budget = 8 * 1024 * 1024                     # bytes for 2x logits blocks
    per_pos = max(1, 2 * num_classes * itemsize)
    max_tile = max(128, (budget // per_pos) // 128 * 128)
    target = min(2048, max_tile)
    if hw <= target:
        return hw                                # full-extent block: always legal
    return target                                # multiple of 128


def label_smooth_ce(logits, label, *, lb_smooth=0.1, reduction="mean",
                    ignore_index=-100, tile_hw=None):
    """logits: (N, C, H, W); label: (N, H, W) int. Matches PyTorch LabelSmoothCE."""
    N, C, H, W = logits.shape
    HW = H * W

    # Free, contiguous reshapes — no transpose, no pad, no dtype cast in HBM.
    x3 = logits.reshape(N, C, HW)
    lbl3 = label.astype(jnp.int32).reshape(N, 1, HW)

    tile = tile_hw if tile_hw is not None else _pick_tile_hw(
        HW, C, jnp.dtype(logits.dtype).itemsize)
    n_tiles = pl.cdiv(HW, tile)

    kernel = functools.partial(
        _ls_ce_kernel,
        lb_pos=1.0 - lb_smooth,
        lb_neg=lb_smooth / C,
        ignore_index=ignore_index,
        hw=HW,
        tile_hw=tile,
    )

    per_elem = pl.pallas_call(
        kernel,
        out_shape=jax.ShapeDtypeStruct((N, 1, HW), jnp.float32),
        grid_spec=pltpu.PrefetchScalarGridSpec(
            num_scalar_prefetch=0,
            grid=(N, n_tiles),
            in_specs=[
                pl.BlockSpec((1, C, tile), lambda n, t: (n, 0, t)),
                pl.BlockSpec((1, 1, tile), lambda n, t: (n, 0, t)),
            ],
            out_specs=pl.BlockSpec((1, 1, tile), lambda n, t: (n, 0, t)),
        ),
        compiler_params=pltpu.CompilerParams(
            dimension_semantics=("parallel", "parallel"),
            vmem_limit_bytes=32 * 1024 * 1024),
    )(x3, lbl3)

    per_elem = per_elem.reshape(N, HW)
    if reduction == "mean":
        n_valid = jnp.sum(label != ignore_index).astype(jnp.float32)
        return jnp.sum(per_elem) / n_valid
    if reduction == "sum":
        return jnp.sum(per_elem)
    return per_elem.reshape(N, H, W)                     # reduction == 'none'


def _reference(logits, label, lb_smooth=0.1, ignore_index=-100):
    """Pure-JAX reference mirroring the PyTorch module.

    Returns (per_element_loss, mean_loss)."""
    logits = logits.astype(jnp.float32)
    C = logits.shape[1]
    ignore = label == ignore_index
    n_valid = jnp.sum(~ignore)
    lbl = jnp.where(ignore, 0, label)
    lb_pos, lb_neg = 1.0 - lb_smooth, lb_smooth / C
    one_hot = jax.nn.one_hot(lbl, C, axis=1) * (lb_pos - lb_neg) + lb_neg
    logs = jax.nn.log_softmax(logits, axis=1)
    loss = -jnp.sum(logs * one_hot, axis=1)
    loss = jnp.where(ignore, 0.0, loss)
    return loss, jnp.sum(loss) / n_valid


if __name__ == "__main__":
    key = jax.random.PRNGKey(0)
    k1, k2, k3, k4 = jax.random.split(key, 4)

    # --- Test 1: original example shapes, mean + none reductions ----------
    N, C, H, W = 2, 4, 16, 16
    logits = jax.random.normal(k1, (N, C, H, W), dtype=jnp.float32)
    label = jax.random.randint(k2, (N, H, W), 0, C, dtype=jnp.int32)
    label = label.at[0, 0, :4].set(-100)        # exercise ignore_index masking
    label = label.at[1, 3, 7].set(-100)

    ref_map, ref_mean = _reference(logits, label)

    out_mean = jax.block_until_ready(
        label_smooth_ce(logits, label, lb_smooth=0.1, reduction="mean"))
    assert jnp.allclose(out_mean, ref_mean, rtol=1e-5, atol=1e-5), (out_mean, ref_mean)

    out_map = jax.block_until_ready(
        label_smooth_ce(logits, label, lb_smooth=0.1, reduction="none"))
    assert jnp.allclose(out_map, ref_map, rtol=1e-5, atol=1e-5)

    # --- Test 2: ragged spatial tile (HW=144, forced tile=128) + odd C ----
    N2, C2, H2, W2 = 2, 5, 12, 12
    logits2 = jax.random.normal(k3, (N2, C2, H2, W2), dtype=jnp.float32)
    label2 = jax.random.randint(k4, (N2, H2, W2), 0, C2, dtype=jnp.int32)
    label2 = label2.at[1, 0, 0].set(-100)

    _, ref_mean2 = _reference(logits2, label2)
    out_mean2 = jax.block_until_ready(
        label_smooth_ce(logits2, label2, reduction="mean", tile_hw=128))
    assert jnp.allclose(out_mean2, ref_mean2, rtol=1e-5, atol=1e-5), (out_mean2, ref_mean2)

    print("KERNEL_OK")
</pallas_src>

<mosaic_0001>
module attributes {stable_mosaic.version = 11 : i64} {
  func.func @_ls_ce_kernel(%arg0: i32, %arg1: i32, %arg2: memref<1x4x256xf32, #tpu.memory_space<vmem>>, %arg3: memref<1x1x256xi32, #tpu.memory_space<vmem>>, %arg4: memref<1x1x256xf32, #tpu.memory_space<vmem>>) attributes {dimension_semantics = [#tpu.dimension_semantics<parallel>, #tpu.dimension_semantics<parallel>], iteration_bounds = array<i64: 2, 1>, scalar_prefetch = 0 : i64, scratch_operands = 0 : i64, tpu.core_type = #tpu.core_type<tc>, window_params = [{transform_indices = @transform_0, window_bounds = array<i64: 1, 4, 256>}, {transform_indices = @transform_1, window_bounds = array<i64: 1, 1, 256>}, {transform_indices = @transform_2, window_bounds = array<i64: 1, 1, 256>}]} {
    %c0 = arith.constant 0 : index
    %c0_0 = arith.constant 0 : index
    %c0_1 = arith.constant 0 : index
    %0 = vector.load %arg2[%c0, %c0_0, %c0_1] : memref<1x4x256xf32, #tpu.memory_space<vmem>>, vector<1x4x256xf32>
    %c0_2 = arith.constant 0 : index
    %c0_3 = arith.constant 0 : index
    %c0_4 = arith.constant 0 : index
    %1 = vector.load %arg3[%c0_2, %c0_3, %c0_4] : memref<1x1x256xi32, #tpu.memory_space<vmem>>, vector<1x1x256xi32>
    %cst = arith.constant dense<0xFF800000> : vector<1x256xf32>
    %2 = vector.multi_reduction <maximumf>, %0, %cst [1] : vector<1x4x256xf32> to vector<1x256xf32>
    %3 = vector.shape_cast %2 : vector<1x256xf32> to vector<1x1x256xf32>
    %4 = vector.broadcast %3 : vector<1x1x256xf32> to vector<1x4x256xf32>
    %5 = arith.subf %0, %4 : vector<1x4x256xf32>
    %6 = math.exp %5 : vector<1x4x256xf32>
    %cst_5 = arith.constant dense<0.000000e+00> : vector<1x256xf32>
    %7 = vector.multi_reduction <add>, %6, %cst_5 [1] : vector<1x4x256xf32> to vector<1x256xf32>
    %8 = vector.shape_cast %7 : vector<1x256xf32> to vector<1x1x256xf32>
    %9 = math.log %8 : vector<1x1x256xf32>
    %10 = arith.addf %3, %9 : vector<1x1x256xf32>
    %cst_6 = arith.constant dense<0.000000e+00> : vector<1x256xf32>
    %11 = vector.multi_reduction <add>, %0, %cst_6 [1] : vector<1x4x256xf32> to vector<1x256xf32>
    %12 = vector.shape_cast %11 : vector<1x256xf32> to vector<1x1x256xf32>
    %13 = tpu.iota {dimensions = array<i32: 1>} : vector<1x4x256xi32>
    %14 = vector.broadcast %1 : vector<1x1x256xi32> to vector<1x4x256xi32>
    %15 = arith.cmpi eq, %13, %14 : vector<1x4x256xi32>
    %cst_7 = arith.constant 0.000000e+00 : f32
    %16 = vector.broadcast %cst_7 : f32 to vector<1x4x256xf32>
    %17 = arith.select %15, %0, %16 : vector<1x4x256xi1>, vector<1x4x256xf32>
    %cst_8 = arith.constant dense<0.000000e+00> : vector<1x256xf32>
    %18 = vector.multi_reduction <add>, %17, %cst_8 [1] : vector<1x4x256xf32> to vector<1x256xf32>
    %19 = vector.shape_cast %18 : vector<1x256xf32> to vector<1x1x256xf32>
    %cst_9 = arith.constant 4.000000e+00 : f32
    %20 = vector.broadcast %cst_9 : f32 to vector<1x1x256xf32>
    %21 = arith.mulf %20, %10 : vector<1x1x256xf32>
    %22 = arith.subf %12, %21 : vector<1x1x256xf32>
    %23 = arith.subf %19, %10 : vector<1x1x256xf32>
    %cst_10 = arith.constant 2.500000e-02 : f32
    %24 = vector.broadcast %cst_10 : f32 to vector<1x1x256xf32>
    %25 = arith.mulf %24, %22 : vector<1x1x256xf32>
    %cst_11 = arith.constant 8.750000e-01 : f32
    %26 = vector.broadcast %cst_11 : f32 to vector<1x1x256xf32>
    %27 = arith.mulf %26, %23 : vector<1x1x256xf32>
    %28 = arith.addf %25, %27 : vector<1x1x256xf32>
    %cst_12 = arith.constant 0.000000e+00 : f32
    %29 = vector.broadcast %cst_12 : f32 to vector<1x1x256xf32>
    %30 = arith.subf %29, %28 : vector<1x1x256xf32>
    %31 = tpu.iota {dimensions = array<i32: 2>} : vector<1x1x256xi32>
    %c256_i32 = arith.constant 256 : i32
    %32 = arith.muli %arg1, %c256_i32 : i32
    %33 = vector.broadcast %32 : i32 to vector<1x1x256xi32>
    %34 = arith.addi %31, %33 : vector<1x1x256xi32>
    %c256_i32_13 = arith.constant 256 : i32
    %35 = vector.broadcast %c256_i32_13 : i32 to vector<1x1x256xi32>
    %36 = arith.cmpi slt, %34, %35 : vector<1x1x256xi32>
    %c-100_i32 = arith.constant -100 : i32
    %37 = vector.broadcast %c-100_i32 : i32 to vector<1x1x256xi32>
    %38 = arith.cmpi ne, %1, %37 : vector<1x1x256xi32>
    %39 = arith.andi %36, %38 : vector<1x1x256xi1>
    %cst_14 = arith.constant 0.000000e+00 : f32
    %40 = vector.broadcast %cst_14 : f32 to vector<1x1x256xf32>
    %41 = arith.select %39, %30, %40 : vector<1x1x256xi1>, vector<1x1x256xf32>
    %c0_15 = arith.constant 0 : index
    %c0_16 = arith.constant 0 : index
    %c0_17 = arith.constant 0 : index
    %42 = vector.load %arg4[%c0_15, %c0_16, %c0_17] : memref<1x1x256xf32, #tpu.memory_space<vmem>>, vector<1x1x256xf32>
    tpu.vector_store %arg4[%c0_15, %c0_16, %c0_17], %41 {strides = array<i32>} : memref<1x1x256xf32, #tpu.memory_space<vmem>>, vector<1x1x256xf32>,
    return
  }
  func.func @transform_0(%arg0: i32, %arg1: i32) -> (i32, i32, i32) {
    %c0_i32 = arith.constant 0 : i32
    %c0_i32_0 = arith.constant 0 : i32
    return %arg0, %c0_i32, %arg1 : i32, i32, i32
  }
  func.func @transform_1(%arg0: i32, %arg1: i32) -> (i32, i32, i32) {
    %c0_i32 = arith.constant 0 : i32
    %c0_i32_0 = arith.constant 0 : i32
    return %arg0, %c0_i32, %arg1 : i32, i32, i32
  }
  func.func @transform_2(%arg0: i32, %arg1: i32) -> (i32, i32, i32) {
    %c0_i32 = arith.constant 0 : i32
    %c0_i32_0 = arith.constant 0 : i32
    return %arg0, %c0_i32, %arg1 : i32, i32, i32
  }
}

</mosaic_0001>

<llo_original>
// kernel: tpu_custom_call.1
$region0: #{tpu_custom_call.1}
  #allocation0 [shape = 'u32[]', space=smem, size = 0x4, offset = 0x4, fixed_abs, tag = 'smem constant byte address 0x4 - core index']
  #allocation1 [shape = 'u32[144,128]{1,0:T(1,128)}', space=vmem, size = 0x12000, scoped, tag = 'internal scratch']
  %s0 = inlined_call_operand.hbm [shape: f32[2,4,256], index: 0, kind: input, shape index: {}]
  %s1 = inlined_call_operand.hbm [shape: s32[2,1,256], index: 1, kind: input, shape index: {}]
  %s2 = inlined_call_operand.hbm [shape: f32[2,1,256], index: 2, kind: output, shape index: {}]
  %s3 = sld [smem:[#allocation0]]
  $region49: #{tpu_custom_call.1} parent=0
    _
  %s5 = ssub.s32 1, %s3
  %s6 = scalar_select 0, %s5, %s3
  $region1: #{tpu_custom_call.1} parent=0
    #allocation2 [shape = 'u8[8192]{0}', space=vmem, size = 0x2000, scoped, tag = 'input window, operand 0']
    #allocation3 [shape = 's32[2]{0}', space=sflag, size = 0x8, scoped, tag = 'scoped memory for tpu_custom_call.1']
    #allocation4 [shape = 's32[2]{0}', space=sflag, size = 0x8, scoped, tag = 'scoped memory for tpu_custom_call.1']
    #allocation5 [shape = 'u8[2048]{0}', space=vmem, size = 0x800, scoped, tag = 'input window, operand 1']
    #allocation6 [shape = 's32[2]{0}', space=sflag, size = 0x8, scoped, tag = 'scoped memory for tpu_custom_call.1']
    #allocation7 [shape = 'u8[2048]{0}', space=vmem, size = 0x800, scoped, tag = 'output window, operand 0']
    %7 = vsyncpa [#allocation3], 0
    %s8 = scalar_lea.sflag [#allocation3], 1
    %9 = vsyncpa %s8, 0
    %10 = vsyncpa [#allocation6], 0
    %s11 = scalar_lea.sflag [#allocation6], 1
    %12 = vsyncpa %s11, 0
    %13 = vsyncpa [#allocation4], 0
    %s14 = scalar_lea.sflag [#allocation4], 1
    %15 = vsyncpa %s14, 0
    loop: start=0, step=1, limit=4
    $region2: #{tpu_custom_call.1} parent=1 // loop_pre_header
      _
    $region3: #{tpu_custom_call.1} parent=1 // loop_header
      %s17 = sphi 0, %s21
      %p18 = scmp.ge.s32.totalorder %s17, 4
      %s24 = sphi 0, %s36
      %s25 = sphi 0, %s32
      %s26 = sphi 0, %s24
      %s27 = sphi 0, %s25
      %s28 = sphi 0, %s26
      %s29 = sphi 0, %s27
      %s41 = sphi 0, %s43
      %s44 = sphi 0, %s41
      %s45 = sphi 0, %s44
      %s61 = sphi 0, %s45
      %s69 = sphi 0, %s71
      %s72 = sphi 0, %s69
      %s73 = sphi 0, %s72
      %s89 = sphi 0, %s73
      %s97 = sphi 0, %s99
      %s100 = sphi 0, %s97
      %s101 = sphi 0, %s100
      %s117 = sphi 0, %s101
    $region4: #{tpu_custom_call.1} parent=1 // loop_header_branch
      %20 = sbr.rel (%p18) target = $region8
    $region5: #{tpu_custom_call.1} parent=1 // loop_body
      %s22 = ssub.s32 %s17, 1
      %s23 = ssub.s32 %s17, 2
      %s30 = sadd.s32 1, %s25
      %p31 = scmp.ge.s32.totalorder %s30, 1
      %s32 = scalar_select %p31, 0, %s30
      %s33 = sadd.s32 1, %s24
      %s34 = scalar_select %p31, %s33, %s24
      %p35 = scmp.ge.s32.totalorder %s34, 2
      %s36 = scalar_select %p35, 0, %s34
      %s37 = ssub.s32 %s24, %s36
      %s38 = ssub.s32 %s25, %s32
      %s39 = sor.u32 %s37, %s38
      %p40 = scmp.eq.s32.totalorder %s39, 0
      %s42 = sadd.s32 %s41, 1
      %s43 = scalar_select %p40, %s41, %s42
      %p46 = pneg %p40
      %p47 = scmp.eq.s32.totalorder %s17, 1
      %p48 = por %p46, %p47
      %p49 = scmp.ne.s32.totalorder %s41, %s44
      %p50 = scmp.eq.s32.totalorder %s17, 0
      %p51 = por %p49, %p50
      %p52 = scmp.ne.s32.totalorder %s41, %s44
      %p53 = scmp.eq.s32.totalorder %s22, 1
      %p54 = por %p52, %p53
      %p55 = scmp.ne.s32.totalorder %s44, %s45
      %p56 = scmp.eq.s32.totalorder %s22, 0
      %p57 = por %p55, %p56
      %p58 = scmp.ne.s32.totalorder %s44, %s45
      %p59 = scmp.eq.s32.totalorder %s23, 1
      %p60 = por %p58, %p59
      %p62 = scmp.ne.s32.totalorder %s45, %s61
      %p63 = scmp.eq.s32.totalorder %s23, 0
      %p64 = por %p62, %p63
      %s65 = ssub.s32 %s24, %s36
      %s66 = ssub.s32 %s25, %s32
      %s67 = sor.u32 %s65, %s66
      %p68 = scmp.eq.s32.totalorder %s67, 0
      %s70 = sadd.s32 %s69, 1
      %s71 = scalar_select %p68, %s69, %s70
      %p74 = pneg %p68
      %p75 = scmp.eq.s32.totalorder %s17, 1
      %p76 = por %p74, %p75
      %p77 = scmp.ne.s32.totalorder %s69, %s72
      %p78 = scmp.eq.s32.totalorder %s17, 0
      %p79 = por %p77, %p78
      %p80 = scmp.ne.s32.totalorder %s69, %s72
      %p81 = scmp.eq.s32.totalorder %s22, 1
      %p82 = por %p80, %p81
      %p83 = scmp.ne.s32.totalorder %s72, %s73
      %p84 = scmp.eq.s32.totalorder %s22, 0
      %p85 = por %p83, %p84
      %p86 = scmp.ne.s32.totalorder %s72, %s73
      %p87 = scmp.eq.s32.totalorder %s23, 1
      %p88 = por %p86, %p87
      %p90 = scmp.ne.s32.totalorder %s73, %s89
      %p91 = scmp.eq.s32.totalorder %s23, 0
      %p92 = por %p90, %p91
      %s93 = ssub.s32 %s24, %s36
      %s94 = ssub.s32 %s25, %s32
      %s95 = sor.u32 %s93, %s94
      %p96 = scmp.eq.s32.totalorder %s95, 0
      %s98 = sadd.s32 %s97, 1
      %s99 = scalar_select %p96, %s97, %s98
      %p102 = pneg %p96
      %p103 = scmp.eq.s32.totalorder %s17, 1
      %p104 = por %p102, %p103
      %p105 = scmp.ne.s32.totalorder %s97, %s100
      %p106 = scmp.eq.s32.totalorder %s17, 0
      %p107 = por %p105, %p106
      %p108 = scmp.ne.s32.totalorder %s97, %s100
      %p109 = scmp.eq.s32.totalorder %s22, 1
      %p110 = por %p108, %p109
      %p111 = scmp.ne.s32.totalorder %s100, %s101
      %p112 = scmp.eq.s32.totalorder %s22, 0
      %p113 = por %p111, %p112
      %p114 = scmp.ne.s32.totalorder %s100, %s101
      %p115 = scmp.eq.s32.totalorder %s23, 1
      %p116 = por %p114, %p115
      %p118 = scmp.ne.s32.totalorder %s101, %s117
      %p119 = scmp.eq.s32.totalorder %s23, 0
      %p120 = por %p118, %p119
      %p121 = scmp.le.s32.totalorder 1, %s17
      %p122 = scmp.lt.s32.totalorder %s17, 3
      %p123 = pnand %p121, %p122
      %p124 = pneg %p123
      // Predicated region
      $region9: #{tpu_custom_call.1} parent=5 // pred_check
        _
      $region10: #{tpu_custom_call.1} parent=5 // pred_check_branch
        %126 = sbr.rel (%p123) target = $region12
      $region11: #{tpu_custom_call.1} parent=5 // pred_region
        %s127 = ssub.s32 %s17, 1
      $region12: #{tpu_custom_call.1} parent=5 // pred_fallthru
        _
      %p128 = scmp.lt.s32.totalorder %s17, 2
      // Predicated region
      $region13: #{tpu_custom_call.1} parent=5 // pred_check
        %p129 = pneg %p128
      $region14: #{tpu_custom_call.1} parent=5 // pred_check_branch
        %131 = sbr.rel (%p129) target = $region16
      $region15: #{tpu_custom_call.1} parent=5 // pred_region
        // Predicated region
        $region17: #{tpu_custom_call.1} parent=15 // pred_check
          %p132 = pneg %p51
        $region18: #{tpu_custom_call.1} parent=15 // pred_check_branch
          %134 = sbr.rel (%p132) target = $region20
        $region19: #{tpu_custom_call.1} parent=15 // pred_region
          %s135 = sand.u32 %s41, 1
          %s136 = scalar_lea.sflag [#allocation3], %s135
          %s137 = sand.u32 %s41, 1
          %s138 = smul.addr %s137, 8
          %s139 = scalar_lea.vmem [#allocation2], %s138
          %s140 = smul.u32 2, %s25
          %s142 = ssub.s32 128, 128
          %143 = vsyncadd %s136, %s142
          %s144 = smul.addr %s24, 2
          %s145 = sadd.s32 %s140, %s144
          %s146 = smul.addr %s145, 64
          %s147 = scalar_lea.hbm %s0, %s146
          %s149 = sshll.u32 %s139, 4
          %s150 = int_to_ptr.vmem [resolvable:$true] %s149
          %152 = dma.hbm_to_vmem [thread:$0]  %s147, 128, %s150, %s136
        $region20: #{tpu_custom_call.1} parent=15 // pred_fallthru
          _
        // Predicated region
        $region21: #{tpu_custom_call.1} parent=15 // pred_check
          %p153 = pneg %p79
        $region22: #{tpu_custom_call.1} parent=15 // pred_check_branch
          %155 = sbr.rel (%p153) target = $region24
        $region23: #{tpu_custom_call.1} parent=15 // pred_region
          %s156 = sand.u32 %s69, 1
          %s157 = scalar_lea.sflag [#allocation6], %s156
          %s158 = sand.u32 %s69, 1
          %s159 = smul.addr %s158, 2
          %s160 = scalar_lea.vmem [#allocation5], %s159
          %s161 = smul.u32 2, %s25
          %s163 = ssub.s32 32, 32
          %164 = vsyncadd %s157, %s163
          %s165 = smul.addr %s24, 2
          %s166 = sadd.s32 %s161, %s165
          %s167 = smul.addr %s166, 16
          %s168 = scalar_lea.hbm %s1, %s167
          %s170 = sshll.u32 %s160, 4
          %s171 = int_to_ptr.vmem [resolvable:$true] %s170
          %173 = dma.hbm_to_vmem [thread:$0]  %s168, 32, %s171, %s157
        $region24: #{tpu_custom_call.1} parent=15 // pred_fallthru
          _
      $region16: #{tpu_custom_call.1} parent=5 // pred_fallthru
        _
      %p174 = scmp.le.s32.totalorder 1, %s17
      %p175 = scmp.lt.s32.totalorder %s17, 3
      %p176 = pnand %p174, %p175
      %p177 = pneg %p176
      // Predicated region
      $region25: #{tpu_custom_call.1} parent=5 // pred_check
        _
      $region26: #{tpu_custom_call.1} parent=5 // pred_check_branch
        %179 = sbr.rel (%p176) target = $region28
      $region27: #{tpu_custom_call.1} parent=5 // pred_region
        %s180 = ssub.s32 %s17, 1
        %s181 = sand.u32 %s44, 1
        %s182 = scalar_lea.sflag [#allocation3], %s181
        %s183 = sand.u32 %s44, 1
        %s184 = smul.addr %s183, 8
        %s185 = scalar_lea.vmem [#allocation2], %s184
        // Predicated region
        $region29: #{tpu_custom_call.1} parent=27 // pred_check
          %p186 = pneg %p57
        $region30: #{tpu_custom_call.1} parent=27 // pred_check_branch
          %188 = sbr.rel (%p186) target = $region32
        $region31: #{tpu_custom_call.1} parent=27 // pred_region
          %189 = dma.done %s182, 128
        $region32: #{tpu_custom_call.1} parent=27 // pred_fallthru
          _
        %s190 = sand.u32 %s72, 1
        %s191 = scalar_lea.sflag [#allocation6], %s190
        %s192 = sand.u32 %s72, 1
        %s193 = smul.addr %s192, 2
        %s194 = scalar_lea.vmem [#allocation5], %s193
        // Predicated region
        $region33: #{tpu_custom_call.1} parent=27 // pred_check
          %p195 = pneg %p85
        $region34: #{tpu_custom_call.1} parent=27 // pred_check_branch
          %197 = sbr.rel (%p195) target = $region36
        $region35: #{tpu_custom_call.1} parent=27 // pred_region
          %198 = dma.done %s191, 32
        $region36: #{tpu_custom_call.1} parent=27 // pred_fallthru
          _
        %s199 = sand.u32 %s44, 1
        %s200 = scalar_lea.sflag [#allocation3], %s199
        %s201 = sand.u32 %s44, 1
        %s202 = smul.addr %s201, 8
        %s203 = scalar_lea.vmem [#allocation2], %s202
        %p204 = pneg %p57
        %p205 = pneg %p54
        %s206 = sand.u32 %s72, 1
        %s207 = scalar_lea.sflag [#allocation6], %s206
        %s208 = sand.u32 %s72, 1
        %s209 = smul.addr %s208, 2
        %s210 = scalar_lea.vmem [#allocation5], %s209
        %p211 = pneg %p85
        %p212 = pneg %p82
        %p213 = pneg %p113
        %p214 = pneg %p110
        %s215 = sand.u32 %s100, 1
        %s216 = scalar_lea.sflag [#allocation4], %s215
        %s217 = sand.u32 %s100, 1
        %s218 = smul.addr %s217, 2
        %s219 = scalar_lea.vmem [#allocation7], %s218
        %s220 = smul.u32 2, %s27
        %s221 = smul.u32 2, %s27
        %s222 = smul.u32 2, %s27
        %v223 = vld [vmem:[%s185] sm:$0xff]
        %v224 = vld [vmem:[%s194] sm:$0x3]
        %v226 = vcombine.high %v223, %v223
        %vm228 = vcmask 1043456
        %v229 = vsel %vm228, %v223, -inf
        %v230 = vrot.slane %v229, 4
        %v231 = vmax.f32 %v229, %v230
        %v232 = vrot.slane %v231, 2
        %v233 = vmax.f32 %v231, %v232
        %v234 = vrot.slane %v233, 1
        %v235 = vmax.f32 %v233, %v234
        %v236 = vsel %vm228, %v226, -inf
        %v237 = vrot.slane %v236, 4
        %v238 = vmax.f32 %v236, %v237
        %v239 = vrot.slane %v238, 2
        %v240 = vmax.f32 %v238, %v239
        %v241 = vrot.slane %v240, 1
        %v242 = vmax.f32 %v240, %v241
        %v245 = vcombine.low %v235, %v242
        %v247 = vsub.f32 %v223, %v245
        %v248 = vmul.f32 %v247, 1.442695
        %v249 = vpow.pop %v248
        %v251 = vcombine.high %v249, %v249
        %v253 = vsel %vm228, %v249, 0.0
        %v254 = vrot.slane %v253, 4
        %v255 = vadd.f32 %v253, %v254
        %v256 = vrot.slane %v255, 2
        %v257 = vadd.f32 %v255, %v256
        %v258 = vrot.slane %v257, 1
        %v259 = vadd.f32 %v257, %v258
        %v260 = vsel %vm228, %v251, 0.0
        %v261 = vrot.slane %v260, 4
        %v262 = vadd.f32 %v260, %v261
        %v263 = vrot.slane %v262, 2
        %v264 = vadd.f32 %v262, %v263
        %v265 = vrot.slane %v264, 1
        %v266 = vadd.f32 %v264, %v265
        %v267 = vlog2.pop %v259
        %v268 = vmul.f32 %v267, 0.6931472
        %v269 = vlog2.pop %v266
        %v270 = vmul.f32 %v269, 0.6931472
        %v271 = vadd.f32 %v235, %v268
        %v272 = vadd.f32 %v242, %v270
        %v273 = vsel %vm228, %v223, 0.0
        %v274 = vrot.slane %v273, 4
        %v275 = vadd.f32 %v273, %v274
        %v276 = vrot.slane %v275, 2
        %v277 = vadd.f32 %v275, %v276
        %v278 = vrot.slane %v277, 1
        %v279 = vadd.f32 %v277, %v278
        %v280 = vsel %vm228, %v226, 0.0
        %v281 = vrot.slane %v280, 4
        %v282 = vadd.f32 %v280, %v281
        %v283 = vrot.slane %v282, 2
        %v284 = vadd.f32 %v282, %v283
        %v285 = vrot.slane %v284, 1
        %v286 = vadd.f32 %v284, %v285
        %v287 = vlaneseq
        %v288 = vshrl.u32 %v287, 7
        %v289 = vlaneseq
        %v290 = vshrl.u32 %v289, 7
        %v291 = vsub.s32 0, %v290
        %v292 = vrot.slane %v224, %v291
        %v293 = vlaneseq
        %v294 = vshrl.u32 %v293, 7
        %v295 = vsub.s32 1, %v294
        %v296 = vrot.slane %v224, %v295
        %vm297 = vcmp.eq.s32.totalorder %v288, %v292
        %vm298 = vcmp.eq.s32.totalorder %v288, %v296
        %v299 = vsel %vm297, %v223, 0.0
        %v300 = vsel %vm298, %v226, 0.0
        %v301 = vsel %vm228, %v299, 0.0
        %v302 = vrot.slane %v301, 4
        %v303 = vadd.f32 %v301, %v302
        %v304 = vrot.slane %v303, 2
        %v305 = vadd.f32 %v303, %v304
        %v306 = vrot.slane %v305, 1
        %v307 = vadd.f32 %v305, %v306
        %v308 = vsel %vm228, %v300, 0.0
        %v309 = vrot.slane %v308, 4
        %v310 = vadd.f32 %v308, %v309
        %v311 = vrot.slane %v310, 2
        %v312 = vadd.f32 %v310, %v311
        %v313 = vrot.slane %v312, 1
        %v314 = vadd.f32 %v312, %v313
        %v315 = vmul.f32 %v271, 4.0
        %v316 = vmul.f32 %v272, 4.0
        %v317 = vsub.f32 %v279, %v315
        %v318 = vsub.f32 %v286, %v316
        %v319 = vsub.f32 %v307, %v271
        %v320 = vsub.f32 %v314, %v272
        %v321 = vmul.f32 %v317, 0.025
        %v322 = vmul.f32 %v318, 0.025
        %v323 = vmul.f32 %v319, 0.875
        %v324 = vmul.f32 %v320, 0.875
        %v325 = vadd.f32 %v321, %v323
        %v326 = vadd.f32 %v322, %v324
        %v327 = vsub.f32 0.0, %v325
        %v328 = vsub.f32 0.0, %v326
        %v329 = vlaneseq
        %v330 = vand.u32 %v329, 127
        %v331 = vadd.s32 %v330, 128
        %s332 = smul.u32 %s27, 256
        %v333 = vstv %s332
        %v334 = vadd.s32 %v330, %v333
        %v335 = vadd.s32 %v331, %v333
        %vm336 = vcmp.lt.s32.totalorder %v334, 256
        %vm337 = vcmp.lt.s32.totalorder %v335, 256
        %vm338 = vcmp.ne.s32.totalorder %v224, 4294967196
        %v339 = vsel %vm338, 1, 0
        %v340 = vlaneseq
        %v341 = vshrl.u32 %v340, 7
        %v342 = vsub.s32 0, %v341
        %v343 = vrot.slane %v339, %v342
        %v344 = vlaneseq
        %v345 = vshrl.u32 %v344, 7
        %v346 = vsub.s32 1, %v345
        %v347 = vrot.slane %v339, %v346
        %vm348 = vcmp.ne.s32.totalorder %v343, 0
        %vm349 = vcmp.ne.s32.totalorder %v347, 0
        %vm350 = vmand %vm336, %vm348
        %vm351 = vmand %vm337, %vm349
        %v352 = vsel %vm350, %v327, 0.0
        %v353 = vsel %vm351, %v328, 0.0
        %v356 = vcombine.low %v352, %v353
        %v358 = vunpack.c.l.s4 1966171168
        %v359 = vunpack.c.0.s8 %v358
        %v360 = vlaneseq
        %v361 = vshrl.u32 %v360, 7
        %v362 = vsub.s32 %v359, %v361
        %v363 = vrot.slane %v356, %v362
        %v365 = vunpack.c.l.s4 1966171168
        %v366 = vunpack.c.0.s8 %v365
        %v367 = vlaneseq
        %v368 = vshrl.u32 %v367, 7
        %v369 = vsub.s32 %v366, %v368
        %v370 = vrot.slane %v363, %v369
        %v372 = vlaneseq
        %vm373 = vcmp.ge.s32.totalorder %v372, 0
        %vm374 = vcmp.lt.s32.totalorder %v372, 256
        %vm375 = vmand %vm373, %vm374
        %376 = vst.msk [vmem:[%s219] sm:$0x3] %vm375, %v370
        %s377 = sand.u32 %s100, 1
        %s378 = scalar_lea.sflag [#allocation4], %s377
        %s379 = sand.u32 %s100, 1
        %s380 = smul.addr %s379, 2
        %s381 = scalar_lea.vmem [#allocation7], %s380
        // Predicated region
        $region37: #{tpu_custom_call.1} parent=27 // pred_check
          %p382 = pneg %p110
        $region38: #{tpu_custom_call.1} parent=27 // pred_check_branch
          %384 = sbr.rel (%p382) target = $region40
        $region39: #{tpu_custom_call.1} parent=27 // pred_region
          %s385 = smul.u32 2, %s27
          %s387 = ssub.s32 32, 32
          %388 = vsyncadd %s378, %s387
          %s389 = smul.addr %s26, 2
          %s390 = sadd.s32 %s385, %s389
          %s391 = smul.addr %s390, 16
          %s392 = scalar_lea.hbm %s2, %s391
          %s394 = sshll.u32 %s381, 4
          %s395 = int_to_ptr.vmem [resolvable:$true] %s394
          %397 = dma.vmem_to_hbm [thread:$0]  %s395, 32, %s392, %s378
        $region40: #{tpu_custom_call.1} parent=27 // pred_fallthru
          _
      $region28: #{tpu_custom_call.1} parent=5 // pred_fallthru
        _
      %p398 = scmp.le.s32.totalorder 2, %s17
      // Predicated region
      $region41: #{tpu_custom_call.1} parent=5 // pred_check
        %p399 = pneg %p398
      $region42: #{tpu_custom_call.1} parent=5 // pred_check_branch
        %401 = sbr.rel (%p399) target = $region44
      $region43: #{tpu_custom_call.1} parent=5 // pred_region
        %s402 = ssub.s32 %s17, 2
        // Predicated region
        $region45: #{tpu_custom_call.1} parent=43 // pred_check
          %p403 = pneg %p116
        $region46: #{tpu_custom_call.1} parent=43 // pred_check_branch
          %405 = sbr.rel (%p403) target = $region48
        $region47: #{tpu_custom_call.1} parent=43 // pred_region
          %s406 = sand.u32 %s101, 1
          %s407 = scalar_lea.sflag [#allocation4], %s406
          %s408 = sand.u32 %s101, 1
          %s409 = smul.addr %s408, 2
          %s410 = scalar_lea.vmem [#allocation7], %s409
          %411 = dma.done %s407, 32
        $region48: #{tpu_custom_call.1} parent=43 // pred_fallthru
          _
      $region44: #{tpu_custom_call.1} parent=5 // pred_fallthru
        _
    $region6: #{tpu_custom_call.1} parent=1 // loop_footer
      %s21 = sadd.s32 1, %s17
    $region7: #{tpu_custom_call.1} parent=1 // loop_footer_branch
      %16 = sbr.rel target = $region3
    $region8: #{tpu_custom_call.1} parent=1 // loop_exit
      _
    %412 = vsyncpa [#allocation3], 1
    %s413 = scalar_lea.sflag [#allocation3], 1
    %414 = vsyncpa %s413, 1
    %415 = vsyncpa [#allocation6], 1
    %s416 = scalar_lea.sflag [#allocation6], 1
    %417 = vsyncpa %s416, 1
    %418 = vsyncpa [#allocation4], 1
    %s419 = scalar_lea.sflag [#allocation4], 1
    %420 = vsyncpa %s419, 1

</llo_original>
